<compile_context>
chip_gen: v6e
topology: v6e:2x2x1
jax: 0.10.0
libtpu: 0.0.40
codegen_flags: <defaults>
</compile_context>

<pallas_src>
import functools

import jax
import jax.numpy as jnp
from jax import lax
from jax.experimental import pallas as pl
from jax.experimental.pallas import tpu as pltpu


def _round_up(x, m):
    return ((x + m - 1) // m) * m


def _linear_kernel_acc(x_ref, w_ref, o_ref, acc_ref, *, compute_dtype):
    # acc[m, n] += x[m, k] @ W[n, k]^T  (contract last axis of both operands).
    @pl.when(pl.program_id(2) == 0)
    def _():
        acc_ref[...] = jnp.zeros_like(acc_ref)

    acc_ref[...] += lax.dot_general(
        x_ref[...].astype(compute_dtype),
        w_ref[...].astype(compute_dtype),
        dimension_numbers=(((1,), (1,)), ((), ())),
        preferred_element_type=jnp.float32,
    )

    @pl.when(pl.program_id(2) == pl.num_programs(2) - 1)
    def _():
        o_ref[...] = acc_ref[...].astype(o_ref.dtype)


def _linear_kernel_single_k(x_ref, w_ref, o_ref, *, compute_dtype):
    # Whole reduction in one tile: skip the accumulator VMEM round trip.
    o_ref[...] = lax.dot_general(
        x_ref[...].astype(compute_dtype),
        w_ref[...].astype(compute_dtype),
        dimension_numbers=(((1,), (1,)), ((), ())),
        preferred_element_type=jnp.float32,
    ).astype(o_ref.dtype)


@functools.partial(jax.jit, static_argnames=("tm", "tn", "tk", "use_bf16"))
def simplelinear_forward(x, weight, *, tm=512, tn=512, tk=2048, use_bf16=True):
    """out = x @ weight.T, matching torch.nn.Linear(inputSize, outputSize, bias=False).

    x: (M, K) ; weight: (N, K)  ->  out: (M, N)
    """
    M, K = x.shape
    N, Kw = weight.shape
    assert K == Kw, "weight inner dim must match x inner dim"

    out_dtype = x.dtype
    compute_dtype = jnp.bfloat16 if use_bf16 else x.dtype

    # Persistently-bf16 weight: one tiny cast pass, halves the weight bytes the
    # kernel fetches from HBM on every tile (x is cast per-tile in-kernel).
    if use_bf16 and weight.dtype != jnp.bfloat16:
        weight = weight.astype(jnp.bfloat16)

    # Sublane packing: 16 rows per packed tile for bf16 x/out blocks, 8 for f32.
    sub = 16 if jnp.dtype(x.dtype) == jnp.dtype(jnp.bfloat16) else 8
    tm = max(sub, min(tm, _round_up(M, sub)))
    tn = max(128, min(tn, _round_up(N, 128)))

    # K must be zero-padded to a multiple of tk: over-read garbage along the
    # reduction axis would corrupt results (unlike M/N edge blocks, which only
    # feed discarded/masked output elements).
    Kp128 = _round_up(K, 128)
    if Kp128 <= tk:
        tk = Kp128
        Kp = Kp128
    else:
        tk = _round_up(tk, 128)
        Kp = _round_up(K, tk)
    if Kp != K:
        x = jnp.pad(x, ((0, 0), (0, Kp - K)))
        weight = jnp.pad(weight, ((0, 0), (0, Kp - K)))

    grid_m = pl.cdiv(M, tm)
    grid_n = pl.cdiv(N, tn)
    grid_k = Kp // tk
    grid = (grid_m, grid_n, grid_k)  # M first (megacore), K (reduction) last.

    xb = jnp.dtype(x.dtype).itemsize
    wb = jnp.dtype(weight.dtype).itemsize
    ob = jnp.dtype(out_dtype).itemsize

    # Honest HBM-traffic estimate: x re-read per N tile, W re-read per M tile.
    cost = pl.CostEstimate(
        flops=2 * M * N * Kp,
        transcendentals=0,
        bytes_accessed=grid_n * M * Kp * xb + grid_m * N * Kp * wb + M * N * ob,
    )

    # VMEM budget: double-buffered x/W/out tiles (+ f32 accumulator when the
    # reduction is multi-step), with headroom, clamped to v7x's 64 MiB physical.
    vmem_bytes = (
        2 * (tm * tk * xb + tn * tk * wb)
        + 2 * tm * tn * ob
        + (tm * tn * 4 if grid_k > 1 else 0)
    )
    vmem_limit = min(vmem_bytes + (4 << 20), 64 << 20)

    in_specs = [
        # x tile depends on (m, k) only.
        pl.BlockSpec((tm, tk), lambda m, n, k: (m, k)),
        # Weight tile never depends on m: if the whole weight fits one (tn, tk)
        # tile its block index is constant and it stays resident across all M.
        pl.BlockSpec((tn, tk), lambda m, n, k: (n, k)),
    ]
    out_specs = pl.BlockSpec((tm, tn), lambda m, n, k: (m, n))

    if grid_k == 1:
        kernel = functools.partial(_linear_kernel_single_k, compute_dtype=compute_dtype)
        scratch_shapes = []
    else:
        kernel = functools.partial(_linear_kernel_acc, compute_dtype=compute_dtype)
        scratch_shapes = [pltpu.VMEM((tm, tn), jnp.float32)]

    return pl.pallas_call(
        kernel,
        out_shape=jax.ShapeDtypeStruct((M, N), out_dtype),
        grid_spec=pltpu.PrefetchScalarGridSpec(
            num_scalar_prefetch=0,
            grid=grid,
            in_specs=in_specs,
            out_specs=out_specs,
            scratch_shapes=scratch_shapes,
        ),
        compiler_params=pltpu.CompilerParams(
            dimension_semantics=("parallel", "parallel", "arbitrary"),
            vmem_limit_bytes=vmem_limit,
        ),
        cost_estimate=cost,
    )(x, weight)


def _reference(x, w, use_bf16=True):
    # Reference with matched operand precision (bf16 operands, f32 accumulate).
    if use_bf16:
        xr = x.astype(jnp.bfloat16).astype(jnp.float32)
        wr = w.astype(jnp.bfloat16).astype(jnp.float32)
    else:
        xr, wr = x, w
    return jnp.dot(xr, wr.T, precision=jax.lax.Precision.HIGHEST).astype(x.dtype)


if __name__ == "__main__":
    # Small shapes consistent with the module: inputSize=32, outputSize=16, batch=8.
    batch, input_size, output_size = 8, 32, 16

    key = jax.random.PRNGKey(0)
    kx, kw = jax.random.split(key)
    x = jax.random.normal(kx, (batch, input_size), dtype=jnp.float32)
    # Deterministic init mirroring torch.nn.Linear's uniform(-1/sqrt(in), 1/sqrt(in)).
    bound = 1.0 / (input_size ** 0.5)
    weight = jax.random.uniform(
        kw, (output_size, input_size), dtype=jnp.float32,
        minval=-bound, maxval=bound,
    )

    out = jax.block_until_ready(simplelinear_forward(x, weight))
    ref = _reference(x, weight)
    assert out.shape == (batch, output_size)
    assert jnp.allclose(out, ref, atol=1e-3, rtol=1e-3)

    # Second check: unaligned, multi-tile shapes (edge blocks along M and N,
    # zero-padded K, multi-step reduction via small tk) exercising the acc path.
    kx2, kw2 = jax.random.split(jax.random.PRNGKey(1))
    x2 = jax.random.normal(kx2, (1200, 200), dtype=jnp.float32)
    w2 = 0.05 * jax.random.normal(kw2, (200, 200), dtype=jnp.float32)
    out2 = jax.block_until_ready(simplelinear_forward(x2, w2, tk=128))
    ref2 = _reference(x2, w2)
    assert out2.shape == (1200, 200)
    assert jnp.allclose(out2, ref2, atol=2e-3, rtol=2e-3)

    print("KERNEL_OK")
</pallas_src>

<mosaic_0001>
module attributes {stable_mosaic.version = 11 : i64} {
  func.func @_linear_kernel_single_k(%arg0: i32, %arg1: i32, %arg2: i32, %arg3: memref<8x128xf32, #tpu.memory_space<vmem>>, %arg4: memref<128x128xbf16, #tpu.memory_space<vmem>>, %arg5: memref<8x128xf32, #tpu.memory_space<vmem>>) attributes {dimension_semantics = [#tpu.dimension_semantics<parallel>, #tpu.dimension_semantics<parallel>, #tpu.dimension_semantics<arbitrary>], iteration_bounds = array<i64: 1, 1, 1>, scalar_prefetch = 0 : i64, scratch_operands = 0 : i64, tpu.core_type = #tpu.core_type<tc>, window_params = [{transform_indices = @transform_0, window_bounds = array<i64: 8, 128>}, {transform_indices = @transform_1, window_bounds = array<i64: 128, 128>}, {transform_indices = @transform_2, window_bounds = array<i64: 8, 128>}]} {
    %c0 = arith.constant 0 : index
    %c0_0 = arith.constant 0 : index
    %0 = vector.load %arg3[%c0, %c0_0] : memref<8x128xf32, #tpu.memory_space<vmem>>, vector<8x128xf32>
    %1 = arith.truncf %0 : vector<8x128xf32> to vector<8x128xbf16>
    %c0_1 = arith.constant 0 : index
    %c0_2 = arith.constant 0 : index
    %2 = vector.load %arg4[%c0_1, %c0_2] : memref<128x128xbf16, #tpu.memory_space<vmem>>, vector<128x128xbf16>
    %cst = arith.constant dense<0.000000e+00> : vector<8x128xf32>
    %3 = tpu.matmul %1, %2, %cst {dimension_numbers = #tpu.dot_dimension_numbers<[1], [1], [0], [0], [0, 0, 1, 0], [], []>} : vector<8x128xbf16>, vector<128x128xbf16>, vector<8x128xf32> -> vector<8x128xf32>
    %c0_3 = arith.constant 0 : index
    %c0_4 = arith.constant 0 : index
    %4 = vector.load %arg5[%c0_3, %c0_4] : memref<8x128xf32, #tpu.memory_space<vmem>>, vector<8x128xf32>
    tpu.vector_store %arg5[%c0_3, %c0_4], %3 {strides = array<i32>} : memref<8x128xf32, #tpu.memory_space<vmem>>, vector<8x128xf32>,
    return
  }
  func.func @transform_0(%arg0: i32, %arg1: i32, %arg2: i32) -> (i32, i32) {
    %c0_i32 = arith.constant 0 : i32
    return %arg0, %arg2 : i32, i32
  }
  func.func @transform_1(%arg0: i32, %arg1: i32, %arg2: i32) -> (i32, i32) {
    %c0_i32 = arith.constant 0 : i32
    return %arg1, %arg2 : i32, i32
  }
  func.func @transform_2(%arg0: i32, %arg1: i32, %arg2: i32) -> (i32, i32) {
    %c0_i32 = arith.constant 0 : i32
    return %arg0, %arg1 : i32, i32
  }
}

</mosaic_0001>

<llo_original>
// kernel: simplelinear_forward.1
$region0: #{simplelinear_forward.1}
  #allocation0 [shape = 'u32[]', space=smem, size = 0x4, offset = 0x4, fixed_abs, tag = 'smem constant byte address 0x4 - core index']
  #allocation1 [shape = 'u32[144,128]{1,0:T(1,128)}', space=vmem, size = 0x12000, scoped, tag = 'internal scratch']
  %s0 = inlined_call_operand.vmem [shape: f32[8,128], index: 0, kind: input, shape index: {}]
  %s1 = inlined_call_operand.vmem [shape: bf16[16,128], index: 1, kind: input, shape index: {}]
  %s2 = inlined_call_operand.hbm [shape: f32[8,16], index: 2, kind: output, shape index: {}]
  %s3 = sld [smem:[#allocation0]]
  $region18: #{simplelinear_forward.1} parent=0
    _
  %s5 = ssub.s32 1, %s3
  %s6 = scalar_select 0, %s5, %s3
  $region1: #{simplelinear_forward.1} parent=0
    #allocation2 [shape = 'u8[4096]{0}', space=vmem, size = 0x1000, scoped, tag = 'output window, operand 0, single buffered']
    #allocation3 [shape = 's32[1]{0}', space=sflag, size = 0x4, scoped, tag = 'scoped memory for simplelinear_forward.1']
    %7 = vsyncpa [#allocation3], 0
    // Predicated region
    $region2: #{simplelinear_forward.1} parent=1 // pred_check
      _
    $region3: #{simplelinear_forward.1} parent=1 // pred_check_branch
      %9 = sbr.rel (0) target = $region5
    $region4: #{simplelinear_forward.1} parent=1 // pred_region
      _
    $region5: #{simplelinear_forward.1} parent=1 // pred_fallthru
      _
    // Predicated region
    $region6: #{simplelinear_forward.1} parent=1 // pred_check
      _
    $region7: #{simplelinear_forward.1} parent=1 // pred_check_branch
      %11 = sbr.rel (0) target = $region9
    $region8: #{simplelinear_forward.1} parent=1 // pred_region
      _
    $region9: #{simplelinear_forward.1} parent=1 // pred_fallthru
      _
    %v13 = vld [vmem:[%s0] sm:$0xff]
    %v14 = vpack.c.bf16 %v13, %v13
    %v15 = vld [vmem:[%s1] sm:$0xf]
    %v16 = vld [vmem:[%s1 + $0x4] sm:$0xf]
    %v17 = vld [vmem:[%s1 + $0x8] sm:$0xf]
    %v18 = vld [vmem:[%s1 + $0xc] sm:$0xf]
    %v19 = vld [vmem:[%s1 + $0x10] sm:$0xf]
    %v20 = vld [vmem:[%s1 + $0x14] sm:$0xf]
    %v21 = vld [vmem:[%s1 + $0x18] sm:$0xf]
    %v22 = vld [vmem:[%s1 + $0x1c] sm:$0xf]
    %v23 = vld [vmem:[%s1 + $0x20] sm:$0xf]
    %v24 = vld [vmem:[%s1 + $0x24] sm:$0xf]
    %v25 = vld [vmem:[%s1 + $0x28] sm:$0xf]
    %v26 = vld [vmem:[%s1 + $0x2c] sm:$0xf]
    %v27 = vld [vmem:[%s1 + $0x30] sm:$0xf]
    %v28 = vld [vmem:[%s1 + $0x34] sm:$0xf]
    %v29 = vld [vmem:[%s1 + $0x38] sm:$0xf]
    %v30 = vld [vmem:[%s1 + $0x3c] sm:$0xf]
    %v47 = vunpack.c.l.b16 %v15
    %v48 = vunpack.c.l.b16 %v16
    %v49 = vunpack.c.l.b16 %v17
    %v50 = vunpack.c.l.b16 %v18
    %v51 = vunpack.c.l.b16 %v19
    %v52 = vunpack.c.l.b16 %v20
    %v53 = vunpack.c.l.b16 %v21
    %v54 = vunpack.c.l.b16 %v22
    %v55 = vunpack.c.l.b16 %v23
    %v56 = vunpack.c.l.b16 %v24
    %v57 = vunpack.c.l.b16 %v25
    %v58 = vunpack.c.l.b16 %v26
    %v59 = vunpack.c.l.b16 %v27
    %v60 = vunpack.c.l.b16 %v28
    %v61 = vunpack.c.l.b16 %v29
    %v62 = vunpack.c.l.b16 %v30
    %v63 = vpack.c.b16 %v48, %v47
    %v64 = vpack.c.b16 %v50, %v49
    %v65 = vpack.c.b16 %v52, %v51
    %v66 = vpack.c.b16 %v54, %v53
    %v67 = vpack.c.b16 %v56, %v55
    %v68 = vpack.c.b16 %v58, %v57
    %v69 = vpack.c.b16 %v60, %v59
    %v70 = vpack.c.b16 %v62, %v61
    %79 = vmatprep.subr.bf16.mxu0 0
    %80 = vmatpush1.bf16.xpose.msra.mxu0 %v70
    %81 = vmatprep.subr.bf16.mxu0 0
    %82 = vmatpush1.bf16.xpose.msra.mxu0 %v69
    %83 = vmatprep.subr.bf16.mxu0 0
    %84 = vmatpush1.bf16.xpose.msra.mxu0 %v68
    %85 = vmatprep.subr.bf16.mxu0 0
    %86 = vmatpush1.bf16.xpose.msra.mxu0 %v67
    %87 = vmatprep.subr.bf16.mxu0 0
    %88 = vmatpush1.bf16.xpose.msra.mxu0 %v66
    %89 = vmatprep.subr.bf16.mxu0 0
    %90 = vmatpush1.bf16.xpose.msra.mxu0 %v65
    %91 = vmatprep.subr.bf16.mxu0 0
    %92 = vmatpush1.bf16.xpose.msra.mxu0 %v64
    %93 = vmatprep.subr.bf16.mxu0 0
    %94 = vmatpush1.bf16.xpose.msra.mxu0 %v63
    %95 = vmatprep.subr.bf16.mxu0 0
    %96 = vmatpush2.bf16.xpose.msra.mxu0 0
    %97 = vmatprep.subr.bf16.mxu0 0
    %98 = vmatpush2.bf16.xpose.msra.mxu0 0
    %99 = vmatprep.subr.bf16.mxu0 0
    %100 = vmatpush2.bf16.xpose.msra.mxu0 0
    %101 = vmatprep.subr.bf16.mxu0 0
    %102 = vmatpush2.bf16.xpose.msra.mxu0 0
    %103 = vmatprep.subr.bf16.mxu0 0
    %104 = vmatpush2.bf16.xpose.msra.mxu0 0
    %105 = vmatprep.subr.bf16.mxu0 0
    %106 = vmatpush2.bf16.xpose.msra.mxu0 0
    %107 = vmatprep.subr.bf16.mxu0 0
    %108 = vmatpush2.bf16.xpose.msra.mxu0 0
    %109 = vmatprep.subr.bf16.mxu0 0
    %110 = vmatpush2.bf16.xpose.msra.mxu0 0
    %111 = vmatprep.mubr.bf16.mxu0 0
    %112 = vmatmul.mubr.bf16.gmra.mxu0 %v14
    %v113 = vpop.f32.mrf.mxu0
    %v114 = vadd.f32 0.0, %v113
    %v115 = vpop.f32.mrf.mxu0
    %v116 = vpop.f32.mrf.mxu0
    %v117 = vpop.f32.mrf.mxu0
    %118 = vdwg.mxu0
    %119 = vst [vmem:[#allocation2] sm:$0xff] %v114
    // Predicated region
    $region10: #{simplelinear_forward.1} parent=1 // pred_check
      _
    $region11: #{simplelinear_forward.1} parent=1 // pred_check_branch
      %121 = sbr.rel (0) target = $region13
    $region12: #{simplelinear_forward.1} parent=1 // pred_region
      %s123 = ssub.s32 128, 128
      %124 = vsyncadd [#allocation3], %s123
      %s126 = sshll.u32 [#allocation2], 4
      %s127 = int_to_ptr.vmem [resolvable:$true] %s126
      %129 = dma.vmem_to_hbm [thread:$0]  %s127, 128, %s2, [#allocation3]
    $region13: #{simplelinear_forward.1} parent=1 // pred_fallthru
      _
    // Predicated region
    $region14: #{simplelinear_forward.1} parent=1 // pred_check
      _
    $region15: #{simplelinear_forward.1} parent=1 // pred_check_branch
      %131 = sbr.rel (0) target = $region17
    $region16: #{simplelinear_forward.1} parent=1 // pred_region
      %132 = dma.done [#allocation3], 128
    $region17: #{simplelinear_forward.1} parent=1 // pred_fallthru
      _
    %133 = vsyncpa [#allocation3], 1

</llo_original>
